<compile_context>
chip_gen: v5e
topology: v5e:2x2
jax: 0.10.0
libtpu: 0.0.40
codegen_flags: <defaults>
</compile_context>

<pallas_src>
import numpy as np
import jax
import jax.numpy as jnp
from jax.experimental import pallas as pl
from jax.experimental.pallas import tpu as pltpu

BIN_SIZES = (1, 2, 3, 6)
BN_EPS = 1e-5


def _round_up(x, m):
    return ((x + m - 1) // m) * m


# --------------------------------------------------------------------------
# Pallas kernel 1: adaptive average pool (NHWC) -> (N, 6, 6, C)
# Tiled over (batch, 6 row-strips, C chunks); accumulates in f32.
# --------------------------------------------------------------------------
def _pool6_kernel(x_ref, o_ref):
    # x_ref: (1, hb, W, tc)  -- one of the 6 row strips of one image
    # o_ref: (1, 1, 6, tc)   -- the 6 pooled cells of that strip
    _, hb, W, _ = x_ref.shape
    wb = W // 6
    inv = 1.0 / float(hb * wb)
    x = x_ref[...].astype(jnp.float32)
    s = jnp.sum(x, axis=1, keepdims=True)            # (1, 1, W, tc)
    for j in range(6):                               # 6 static W-segments
        seg = s[:, :, j * wb:(j + 1) * wb, :]
        o_ref[:, :, j:j + 1, :] = (
            jnp.sum(seg, axis=2, keepdims=True) * inv).astype(o_ref.dtype)


def adaptive_pool6(x_nhwc, *, c_tile=1024):
    N, H, W, C = x_nhwc.shape
    assert H % 6 == 0 and W % 6 == 0, "H and W must be divisible by 6"
    hb = H // 6
    # Either the full channel dim or a 128-multiple chunk (lane constraint).
    tc = C if C <= c_tile else c_tile
    assert tc == C or tc % 128 == 0
    grid = (N, 6, pl.cdiv(C, tc))
    return pl.pallas_call(
        _pool6_kernel,
        out_shape=jax.ShapeDtypeStruct((N, 6, 6, C), x_nhwc.dtype),
        grid=grid,
        in_specs=[pl.BlockSpec((1, hb, W, tc), lambda n, i, c: (n, i, 0, c))],
        out_specs=pl.BlockSpec((1, 1, 6, tc), lambda n, i, c: (n, i, 0, c)),
        compiler_params=pltpu.CompilerParams(
            dimension_semantics=("parallel", "parallel", "parallel")),
    )(x_nhwc)


# --------------------------------------------------------------------------
# Pallas kernel 2: fused final 1x1 conv + add of the upsampled pyramid term
#   out[m, :] = x2d[m, :] @ w_x  +  up2d[m, :]
# --------------------------------------------------------------------------
def _final_kernel(a_ref, w_ref, up_ref, o_ref):
    acc = jnp.dot(a_ref[...], w_ref[...], preferred_element_type=jnp.float32)
    o_ref[...] = (acc + up_ref[...].astype(jnp.float32)).astype(o_ref.dtype)


def final_conv_add(x2d, w_x, up2d, *, tm=512, out_dtype=None,
                   matmul_dtype=None):
    M, K = x2d.shape
    _, Nout = w_x.shape
    out_dtype = out_dtype or x2d.dtype
    if matmul_dtype is not None:                     # bf16 MXU path (v6e/v7x)
        x2d = x2d.astype(matmul_dtype)
        w_x = w_x.astype(matmul_dtype)
    tm = min(tm, _round_up(M, 8))                    # lane/sublane aligned
    Mpad = _round_up(M, tm)
    if Mpad != M:                                    # ragged tail only
        x2d = jnp.pad(x2d, ((0, Mpad - M), (0, 0)))
        up2d = jnp.pad(up2d, ((0, Mpad - M), (0, 0)))
    out = pl.pallas_call(
        _final_kernel,
        out_shape=jax.ShapeDtypeStruct((Mpad, Nout), out_dtype),
        grid=(Mpad // tm,),
        in_specs=[pl.BlockSpec((tm, K), lambda i: (i, 0)),
                  pl.BlockSpec((K, Nout), lambda i: (0, 0)),
                  pl.BlockSpec((tm, Nout), lambda i: (i, 0))],
        out_specs=pl.BlockSpec((tm, Nout), lambda i: (i, 0)),
        compiler_params=pltpu.CompilerParams(
            dimension_semantics=("parallel",)),
    )(x2d, w_x, up2d)
    return out[:M] if Mpad != M else out


# --------------------------------------------------------------------------
# Bilinear upsample (align_corners=False) as a dense interpolation matrix
# --------------------------------------------------------------------------
def bilinear_matrix(out_size, in_size):
    h = np.arange(out_size, dtype=np.float64)
    src = np.maximum((h + 0.5) * in_size / out_size - 0.5, 0.0)
    i0 = np.minimum(np.floor(src).astype(np.int64), in_size - 1)
    i1 = np.minimum(i0 + 1, in_size - 1)
    w1 = src - i0
    w0 = 1.0 - w1
    L = np.zeros((out_size, in_size), dtype=np.float32)
    L[np.arange(out_size), i0] += w0
    L[np.arange(out_size), i1] += w1
    return jnp.asarray(L)


# --------------------------------------------------------------------------
# Parameter folding: BN (inference) + branch 1x1 conv + that branch's slice
# of w_end collapse into one (Cin, Nout) matrix and an (Nout,) bias.
# --------------------------------------------------------------------------
def fold_params(raw):
    Cin, mid = raw["w"][0].shape
    w_end = raw["w_end"]                             # (Cin + 4*mid, Nout)
    folded = {"w_x": w_end[:Cin, :], "w_c": [], "b_c": []}
    for i in range(len(BIN_SIZES)):
        scale = raw["gamma"][i] / jnp.sqrt(raw["var"][i] + BN_EPS)
        shift = raw["beta"][i] - raw["mean"][i] * scale
        w_end_i = w_end[Cin + i * mid: Cin + (i + 1) * mid, :]
        folded["w_c"].append((scale[:, None] * raw["w"][i]) @ w_end_i)
        folded["b_c"].append((shift @ raw["w"][i] + raw["b"][i]) @ w_end_i)
    return folded


# --------------------------------------------------------------------------
# PyramidModule forward (NCHW in / NCHW out)
# --------------------------------------------------------------------------
def pyramid_module(x_nchw, raw_params, *, tm=512, matmul_dtype=None):
    N, Cin, H, W = x_nchw.shape
    folded = fold_params(raw_params)
    Nout = folded["w_x"].shape[1]

    x = jnp.transpose(x_nchw, (0, 2, 3, 1))          # NHWC (channels on lanes)
    pool6 = adaptive_pool6(x)                        # Pallas: (N, 6, 6, Cin)

    # 1x1 / 2x2 / 3x3 adaptive pools are exact block-means of the 6x6 pool
    # because H % 6 == 0 and W % 6 == 0.
    def derive_pool(b):
        if b == 6:
            return pool6.astype(jnp.float32)
        f = 6 // b
        return jnp.mean(pool6.reshape(N, b, f, b, f, Cin).astype(jnp.float32),
                        axis=(2, 4))

    # Per-branch contribution to the FINAL output, computed at b x b
    # resolution (linearity: upsample commutes with the 1x1 conv), then
    # bilinearly upsampled. Tiny (<= 36*N rows) -> plain JAX glue.
    up_sum = jnp.zeros((N, H, W, Nout), jnp.float32)
    for i, b in enumerate(BIN_SIZES):
        u = jnp.maximum(derive_pool(b), 0.0)                       # ReLU
        contrib = (jnp.einsum('nijc,co->nijo', u, folded["w_c"][i])
                   + folded["b_c"][i])                             # (N,b,b,Nout)
        Lh = bilinear_matrix(H, b)
        Lw = bilinear_matrix(W, b)
        up_sum = up_sum + jnp.einsum('hi,nijo,wj->nhwo', Lh, contrib, Lw)

    M = N * H * W
    out2d = final_conv_add(x.reshape(M, Cin), folded["w_x"],
                           up_sum.reshape(M, Nout), tm=tm,
                           out_dtype=x.dtype, matmul_dtype=matmul_dtype)
    out = out2d.reshape(N, H, W, Nout)
    return jnp.transpose(out, (0, 3, 1, 2))          # back to NCHW


# --------------------------------------------------------------------------
# Deterministic parameter init (shapes from the PyTorch __init__), with
# non-trivial BN statistics so the folding math is actually exercised.
# --------------------------------------------------------------------------
def init_params(key, in_f, mid_f, out_f):
    raw = {"gamma": [], "beta": [], "mean": [], "var": [], "w": [], "b": []}
    keys = jax.random.split(key, 6 * len(BIN_SIZES) + 1)
    for i in range(len(BIN_SIZES)):
        k = keys[6 * i:6 * (i + 1)]
        raw["gamma"].append(1.0 + 0.1 * jax.random.normal(k[0], (in_f,)))
        raw["beta"].append(0.1 * jax.random.normal(k[1], (in_f,)))
        raw["mean"].append(0.1 * jax.random.normal(k[2], (in_f,)))
        raw["var"].append(0.5 + jnp.abs(jax.random.normal(k[3], (in_f,))))
        raw["w"].append(0.1 * jax.random.normal(k[4], (in_f, mid_f)))
        raw["b"].append(0.1 * jax.random.normal(k[5], (mid_f,)))
    raw["w_end"] = 0.1 * jax.random.normal(keys[-1],
                                           (in_f + 4 * mid_f, out_f))
    return raw


# --------------------------------------------------------------------------
# Pure-JAX reference in the ORIGINAL (unfused) formulation, NCHW, f32 —
# validates both the Pallas kernels and the algebraic fusion.
# --------------------------------------------------------------------------
def reference(x_nchw, raw):
    N, C, H, W = x_nchw.shape
    feats = [x_nchw]
    for i, b in enumerate(BIN_SIZES):
        p = x_nchw.reshape(N, C, b, H // b, b, W // b).mean(axis=(3, 5))
        p = jnp.maximum(p, 0.0)
        scale = raw["gamma"][i] / jnp.sqrt(raw["var"][i] + BN_EPS)
        shift = raw["beta"][i] - raw["mean"][i] * scale
        p = p * scale[None, :, None, None] + shift[None, :, None, None]
        q = (jnp.einsum('ncij,cm->nmij', p, raw["w"][i])
             + raw["b"][i][None, :, None, None])
        Lh = bilinear_matrix(H, b)
        Lw = bilinear_matrix(W, b)
        feats.append(jnp.einsum('hi,nmij,wj->nmhw', Lh, q, Lw))
    cat = jnp.concatenate(feats, axis=1)
    return jnp.einsum('nkhw,ko->nohw', cat, raw["w_end"])


if __name__ == "__main__":
    # Small shapes consistent with the module: N=2, Cin=8, H=W=12 (div by 6).
    N, Cin, MID, OUT, H, W = 2, 8, 8, 8, 12, 12

    key = jax.random.PRNGKey(0)
    kx, kp = jax.random.split(key)
    x = jax.random.normal(kx, (N, Cin, H, W), jnp.float32)
    raw = init_params(kp, Cin, MID, OUT)

    # f32 path; tm=128 here so the toy case exercises multi-block tiling and
    # the ragged-tail padding path (real shapes: use tm=512..1024).
    out = jax.block_until_ready(pyramid_module(x, raw, tm=128))
    ref = jax.block_until_ready(reference(x, raw))
    assert out.shape == (N, OUT, H, W), out.shape
    np.testing.assert_allclose(np.asarray(out), np.asarray(ref),
                               rtol=1e-3, atol=1e-3)

    # bf16 MXU operands (f32 accumulation) — the v6e/v7x fast path.
    out_bf16 = jax.block_until_ready(
        pyramid_module(x, raw, tm=128, matmul_dtype=jnp.bfloat16))
    np.testing.assert_allclose(np.asarray(out_bf16), np.asarray(ref),
                               rtol=3e-2, atol=3e-2)

    print("KERNEL_OK")
</pallas_src>

<mosaic_0001>
module attributes {stable_mosaic.version = 11 : i64} {
  func.func @_pool6_kernel(%arg0: i32, %arg1: i32, %arg2: i32, %arg3: memref<1x2x12x8xf32, #tpu.memory_space<vmem>>, %arg4: memref<1x1x6x8xf32, #tpu.memory_space<vmem>>) attributes {dimension_semantics = [#tpu.dimension_semantics<parallel>, #tpu.dimension_semantics<parallel>, #tpu.dimension_semantics<parallel>], iteration_bounds = array<i64: 2, 6, 1>, scalar_prefetch = 0 : i64, scratch_operands = 0 : i64, tpu.core_type = #tpu.core_type<tc>, window_params = [{transform_indices = @transform_0, window_bounds = array<i64: 1, 2, 12, 8>}, {transform_indices = @transform_1, window_bounds = array<i64: 1, 1, 6, 8>}]} {
    %c0 = arith.constant 0 : index
    %c0_0 = arith.constant 0 : index
    %c0_1 = arith.constant 0 : index
    %c0_2 = arith.constant 0 : index
    %0 = vector.load %arg3[%c0, %c0_0, %c0_1, %c0_2] : memref<1x2x12x8xf32, #tpu.memory_space<vmem>>, vector<1x2x12x8xf32>
    %cst = arith.constant dense<0.000000e+00> : vector<1x12x8xf32>
    %1 = vector.multi_reduction <add>, %0, %cst [1] : vector<1x2x12x8xf32> to vector<1x12x8xf32>
    %2 = vector.shape_cast %1 : vector<1x12x8xf32> to vector<1x1x12x8xf32>
    %3 = vector.extract_strided_slice %2 {offsets = [0, 0, 0, 0], sizes = [1, 1, 2, 8], strides = [1, 1, 1, 1]} : vector<1x1x12x8xf32> to vector<1x1x2x8xf32>
    %cst_3 = arith.constant dense<0.000000e+00> : vector<1x1x8xf32>
    %4 = vector.multi_reduction <add>, %3, %cst_3 [2] : vector<1x1x2x8xf32> to vector<1x1x8xf32>
    %5 = vector.shape_cast %4 : vector<1x1x8xf32> to vector<1x1x1x8xf32>
    %cst_4 = arith.constant 2.500000e-01 : f32
    %6 = vector.broadcast %cst_4 : f32 to vector<1x1x1x8xf32>
    %7 = arith.mulf %5, %6 : vector<1x1x1x8xf32>
    %c0_5 = arith.constant 0 : index
    %c0_6 = arith.constant 0 : index
    %c0_7 = arith.constant 0 : index
    %c0_8 = arith.constant 0 : index
    %8 = vector.load %arg4[%c0_5, %c0_6, %c0_7, %c0_8] : memref<1x1x6x8xf32, #tpu.memory_space<vmem>>, vector<1x1x1x8xf32>
    tpu.vector_store %arg4[%c0_5, %c0_6, %c0_7, %c0_8], %7 {strides = array<i32>} : memref<1x1x6x8xf32, #tpu.memory_space<vmem>>, vector<1x1x1x8xf32>,
    %9 = vector.extract_strided_slice %2 {offsets = [0, 0, 2, 0], sizes = [1, 1, 2, 8], strides = [1, 1, 1, 1]} : vector<1x1x12x8xf32> to vector<1x1x2x8xf32>
    %cst_9 = arith.constant dense<0.000000e+00> : vector<1x1x8xf32>
    %10 = vector.multi_reduction <add>, %9, %cst_9 [2] : vector<1x1x2x8xf32> to vector<1x1x8xf32>
    %11 = vector.shape_cast %10 : vector<1x1x8xf32> to vector<1x1x1x8xf32>
    %cst_10 = arith.constant 2.500000e-01 : f32
    %12 = vector.broadcast %cst_10 : f32 to vector<1x1x1x8xf32>
    %13 = arith.mulf %11, %12 : vector<1x1x1x8xf32>
    %c0_11 = arith.constant 0 : index
    %c0_12 = arith.constant 0 : index
    %c1 = arith.constant 1 : index
    %c0_13 = arith.constant 0 : index
    %14 = vector.load %arg4[%c0_11, %c0_12, %c1, %c0_13] : memref<1x1x6x8xf32, #tpu.memory_space<vmem>>, vector<1x1x1x8xf32>
    tpu.vector_store %arg4[%c0_11, %c0_12, %c1, %c0_13], %13 {strides = array<i32>} : memref<1x1x6x8xf32, #tpu.memory_space<vmem>>, vector<1x1x1x8xf32>,
    %15 = vector.extract_strided_slice %2 {offsets = [0, 0, 4, 0], sizes = [1, 1, 2, 8], strides = [1, 1, 1, 1]} : vector<1x1x12x8xf32> to vector<1x1x2x8xf32>
    %cst_14 = arith.constant dense<0.000000e+00> : vector<1x1x8xf32>
    %16 = vector.multi_reduction <add>, %15, %cst_14 [2] : vector<1x1x2x8xf32> to vector<1x1x8xf32>
    %17 = vector.shape_cast %16 : vector<1x1x8xf32> to vector<1x1x1x8xf32>
    %cst_15 = arith.constant 2.500000e-01 : f32
    %18 = vector.broadcast %cst_15 : f32 to vector<1x1x1x8xf32>
    %19 = arith.mulf %17, %18 : vector<1x1x1x8xf32>
    %c0_16 = arith.constant 0 : index
    %c0_17 = arith.constant 0 : index
    %c2 = arith.constant 2 : index
    %c0_18 = arith.constant 0 : index
    %20 = vector.load %arg4[%c0_16, %c0_17, %c2, %c0_18] : memref<1x1x6x8xf32, #tpu.memory_space<vmem>>, vector<1x1x1x8xf32>
    tpu.vector_store %arg4[%c0_16, %c0_17, %c2, %c0_18], %19 {strides = array<i32>} : memref<1x1x6x8xf32, #tpu.memory_space<vmem>>, vector<1x1x1x8xf32>,
    %21 = vector.extract_strided_slice %2 {offsets = [0, 0, 6, 0], sizes = [1, 1, 2, 8], strides = [1, 1, 1, 1]} : vector<1x1x12x8xf32> to vector<1x1x2x8xf32>
    %cst_19 = arith.constant dense<0.000000e+00> : vector<1x1x8xf32>
    %22 = vector.multi_reduction <add>, %21, %cst_19 [2] : vector<1x1x2x8xf32> to vector<1x1x8xf32>
    %23 = vector.shape_cast %22 : vector<1x1x8xf32> to vector<1x1x1x8xf32>
    %cst_20 = arith.constant 2.500000e-01 : f32
    %24 = vector.broadcast %cst_20 : f32 to vector<1x1x1x8xf32>
    %25 = arith.mulf %23, %24 : vector<1x1x1x8xf32>
    %c0_21 = arith.constant 0 : index
    %c0_22 = arith.constant 0 : index
    %c3 = arith.constant 3 : index
    %c0_23 = arith.constant 0 : index
    %26 = vector.load %arg4[%c0_21, %c0_22, %c3, %c0_23] : memref<1x1x6x8xf32, #tpu.memory_space<vmem>>, vector<1x1x1x8xf32>
    tpu.vector_store %arg4[%c0_21, %c0_22, %c3, %c0_23], %25 {strides = array<i32>} : memref<1x1x6x8xf32, #tpu.memory_space<vmem>>, vector<1x1x1x8xf32>,
    %27 = vector.extract_strided_slice %2 {offsets = [0, 0, 8, 0], sizes = [1, 1, 2, 8], strides = [1, 1, 1, 1]} : vector<1x1x12x8xf32> to vector<1x1x2x8xf32>
    %cst_24 = arith.constant dense<0.000000e+00> : vector<1x1x8xf32>
    %28 = vector.multi_reduction <add>, %27, %cst_24 [2] : vector<1x1x2x8xf32> to vector<1x1x8xf32>
    %29 = vector.shape_cast %28 : vector<1x1x8xf32> to vector<1x1x1x8xf32>
    %cst_25 = arith.constant 2.500000e-01 : f32
    %30 = vector.broadcast %cst_25 : f32 to vector<1x1x1x8xf32>
    %31 = arith.mulf %29, %30 : vector<1x1x1x8xf32>
    %c0_26 = arith.constant 0 : index
    %c0_27 = arith.constant 0 : index
    %c4 = arith.constant 4 : index
    %c0_28 = arith.constant 0 : index
    %32 = vector.load %arg4[%c0_26, %c0_27, %c4, %c0_28] : memref<1x1x6x8xf32, #tpu.memory_space<vmem>>, vector<1x1x1x8xf32>
    tpu.vector_store %arg4[%c0_26, %c0_27, %c4, %c0_28], %31 {strides = array<i32>} : memref<1x1x6x8xf32, #tpu.memory_space<vmem>>, vector<1x1x1x8xf32>,
    %33 = vector.extract_strided_slice %2 {offsets = [0, 0, 10, 0], sizes = [1, 1, 2, 8], strides = [1, 1, 1, 1]} : vector<1x1x12x8xf32> to vector<1x1x2x8xf32>
    %cst_29 = arith.constant dense<0.000000e+00> : vector<1x1x8xf32>
    %34 = vector.multi_reduction <add>, %33, %cst_29 [2] : vector<1x1x2x8xf32> to vector<1x1x8xf32>
    %35 = vector.shape_cast %34 : vector<1x1x8xf32> to vector<1x1x1x8xf32>
    %cst_30 = arith.constant 2.500000e-01 : f32
    %36 = vector.broadcast %cst_30 : f32 to vector<1x1x1x8xf32>
    %37 = arith.mulf %35, %36 : vector<1x1x1x8xf32>
    %c0_31 = arith.constant 0 : index
    %c0_32 = arith.constant 0 : index
    %c5 = arith.constant 5 : index
    %c0_33 = arith.constant 0 : index
    %38 = vector.load %arg4[%c0_31, %c0_32, %c5, %c0_33] : memref<1x1x6x8xf32, #tpu.memory_space<vmem>>, vector<1x1x1x8xf32>
    tpu.vector_store %arg4[%c0_31, %c0_32, %c5, %c0_33], %37 {strides = array<i32>} : memref<1x1x6x8xf32, #tpu.memory_space<vmem>>, vector<1x1x1x8xf32>,
    return
  }
  func.func @transform_0(%arg0: i32, %arg1: i32, %arg2: i32) -> (i32, i32, i32, i32) {
    %c0_i32 = arith.constant 0 : i32
    %c0_i32_0 = arith.constant 0 : i32
    return %arg0, %arg1, %c0_i32, %arg2 : i32, i32, i32, i32
  }
  func.func @transform_1(%arg0: i32, %arg1: i32, %arg2: i32) -> (i32, i32, i32, i32) {
    %c0_i32 = arith.constant 0 : i32
    %c0_i32_0 = arith.constant 0 : i32
    return %arg0, %arg1, %c0_i32, %arg2 : i32, i32, i32, i32
  }
}

</mosaic_0001>

<llo_original>
// kernel: tpu_custom_call.1
$region0: #{tpu_custom_call.1}
  #allocation0 [shape = 'u32[]', space=smem, size = 0x4, offset = 0x4, fixed_abs, tag = 'smem constant byte address 0x4 - core index']
  #allocation1 [shape = 'u32[72,128]{1,0:T(1,128)}', space=vmem, size = 0x9000, scoped, tag = 'internal scratch']
  %s0 = inlined_call_operand.vmem [shape: f32[2,12,12,8], index: 0, kind: input, shape index: {}]
  %s1 = inlined_call_operand.vmem [shape: f32[2,6,6,8], index: 1, kind: output, shape index: {}]
  %s2 = sld [smem:[#allocation0]]
  $region37: #{tpu_custom_call.1} parent=0
    _
  %s4 = ssub.s32 1, %s2
  %s5 = scalar_select 0, %s4, %s2
  loop: start=0, step=1, limit=14
  $region2: #{tpu_custom_call.1} parent=0 // loop_pre_header
    _
  $region3: #{tpu_custom_call.1} parent=0 // loop_header
    %s7 = sphi 0, %s11
    %p8 = scmp.ge.s32.totalorder %s7, 14
    %s14 = sphi 0, %s33
    %s15 = sphi 0, %s29
    %s16 = sphi 0, %s25
    %s17 = sphi 0, %s14
    %s18 = sphi 0, %s15
    %s19 = sphi 0, %s16
    %s20 = sphi 0, %s17
    %s21 = sphi 0, %s18
    %s22 = sphi 0, %s19
    %s40 = sphi 0, %s42
    %s43 = sphi 0, %s40
    %s44 = sphi 0, %s43
    %s60 = sphi 0, %s44
    %s70 = sphi 0, %s72
    %s73 = sphi 0, %s70
    %s74 = sphi 0, %s73
    %s90 = sphi 0, %s74
  $region4: #{tpu_custom_call.1} parent=0 // loop_header_branch
    %10 = sbr.rel (%p8) target = $region8
  $region5: #{tpu_custom_call.1} parent=0 // loop_body
    %s12 = ssub.s32 %s7, 1
    %s13 = ssub.s32 %s7, 2
    %s23 = sadd.s32 1, %s16
    %p24 = scmp.ge.s32.totalorder %s23, 1
    %s25 = scalar_select %p24, 0, %s23
    %s26 = sadd.s32 1, %s15
    %s27 = scalar_select %p24, %s26, %s15
    %p28 = scmp.ge.s32.totalorder %s27, 6
    %s29 = scalar_select %p28, 0, %s27
    %s30 = sadd.s32 1, %s14
    %s31 = scalar_select %p28, %s30, %s14
    %p32 = scmp.ge.s32.totalorder %s31, 2
    %s33 = scalar_select %p32, 0, %s31
    %s34 = ssub.s32 %s14, %s33
    %s35 = ssub.s32 %s15, %s29
    %s36 = sor.u32 %s34, %s35
    %s37 = ssub.s32 %s16, %s25
    %s38 = sor.u32 %s36, %s37
    %p39 = scmp.eq.s32.totalorder %s38, 0
    %s41 = sadd.s32 %s40, 1
    %s42 = scalar_select %p39, %s40, %s41
    %p45 = pneg %p39
    %p46 = scmp.eq.s32.totalorder %s7, 11
    %p47 = por %p45, %p46
    %p48 = scmp.ne.s32.totalorder %s40, %s43
    %p49 = scmp.eq.s32.totalorder %s7, 0
    %p50 = por %p48, %p49
    %p51 = scmp.ne.s32.totalorder %s40, %s43
    %p52 = scmp.eq.s32.totalorder %s12, 11
    %p53 = por %p51, %p52
    %p54 = scmp.ne.s32.totalorder %s43, %s44
    %p55 = scmp.eq.s32.totalorder %s12, 0
    %p56 = por %p54, %p55
    %p57 = scmp.ne.s32.totalorder %s43, %s44
    %p58 = scmp.eq.s32.totalorder %s13, 11
    %p59 = por %p57, %p58
    %p61 = scmp.ne.s32.totalorder %s44, %s60
    %p62 = scmp.eq.s32.totalorder %s13, 0
    %p63 = por %p61, %p62
    %s64 = ssub.s32 %s14, %s33
    %s65 = ssub.s32 %s15, %s29
    %s66 = sor.u32 %s64, %s65
    %s67 = ssub.s32 %s16, %s25
    %s68 = sor.u32 %s66, %s67
    %p69 = scmp.eq.s32.totalorder %s68, 0
    %s71 = sadd.s32 %s70, 1
    %s72 = scalar_select %p69, %s70, %s71
    %p75 = pneg %p69
    %p76 = scmp.eq.s32.totalorder %s7, 11
    %p77 = por %p75, %p76
    %p78 = scmp.ne.s32.totalorder %s70, %s73
    %p79 = scmp.eq.s32.totalorder %s7, 0
    %p80 = por %p78, %p79
    %p81 = scmp.ne.s32.totalorder %s70, %s73
    %p82 = scmp.eq.s32.totalorder %s12, 11
    %p83 = por %p81, %p82
    %p84 = scmp.ne.s32.totalorder %s73, %s74
    %p85 = scmp.eq.s32.totalorder %s12, 0
    %p86 = por %p84, %p85
    %p87 = scmp.ne.s32.totalorder %s73, %s74
    %p88 = scmp.eq.s32.totalorder %s13, 11
    %p89 = por %p87, %p88
    %p91 = scmp.ne.s32.totalorder %s74, %s90
    %p92 = scmp.eq.s32.totalorder %s13, 0
    %p93 = por %p91, %p92
    %p94 = scmp.le.s32.totalorder 1, %s7
    %p95 = scmp.lt.s32.totalorder %s7, 13
    %p96 = pnand %p94, %p95
    %p97 = pneg %p96
    // Predicated region
    $region9: #{tpu_custom_call.1} parent=5 // pred_check
      _
    $region10: #{tpu_custom_call.1} parent=5 // pred_check_branch
      %99 = sbr.rel (%p96) target = $region12
    $region11: #{tpu_custom_call.1} parent=5 // pred_region
      %s100 = ssub.s32 %s7, 1
    $region12: #{tpu_custom_call.1} parent=5 // pred_fallthru
      _
    %p101 = scmp.lt.s32.totalorder %s7, 12
    // Predicated region
    $region13: #{tpu_custom_call.1} parent=5 // pred_check
      %p102 = pneg %p101
    $region14: #{tpu_custom_call.1} parent=5 // pred_check_branch
      %104 = sbr.rel (%p102) target = $region16
    $region15: #{tpu_custom_call.1} parent=5 // pred_region
      // Predicated region
      $region17: #{tpu_custom_call.1} parent=15 // pred_check
        %p105 = pneg %p50
      $region18: #{tpu_custom_call.1} parent=15 // pred_check_branch
        %107 = sbr.rel (%p105) target = $region20
      $region19: #{tpu_custom_call.1} parent=15 // pred_region
        %s108 = smul.u32 2, %s15
        %p109 = scmp.lt.s32.totalorder %s14, 1
        %s110 = scalar_select %p109, %s14, 1
        %p111 = scmp.lt.s32.totalorder %s108, 11
        %s112 = scalar_select %p111, %s108, 11
        %p113 = scmp.lt.s32.totalorder %s16, 0
        %s114 = scalar_select %p113, %s16, 0
        %s115 = smul.addr %s112, 2
        %s116 = sadd.s32 %s114, %s115
        %s117 = smul.addr %s110, 24
        %s118 = sadd.s32 %s116, %s117
        %s119 = smul.addr %s118, 8
        %s120 = scalar_lea.vmem %s0, %s119
        %s121 = smul.u32 2, %s15
      $region20: #{tpu_custom_call.1} parent=15 // pred_fallthru
        _
    $region16: #{tpu_custom_call.1} parent=5 // pred_fallthru
      _
    %p122 = scmp.le.s32.totalorder 1, %s7
    %p123 = scmp.lt.s32.totalorder %s7, 13
    %p124 = pnand %p122, %p123
    %p125 = pneg %p124
    // Predicated region
    $region21: #{tpu_custom_call.1} parent=5 // pred_check
      _
    $region22: #{tpu_custom_call.1} parent=5 // pred_check_branch
      %127 = sbr.rel (%p124) target = $region24
    $region23: #{tpu_custom_call.1} parent=5 // pred_region
      %s128 = ssub.s32 %s7, 1
      %s129 = smul.u32 2, %s18
      %p130 = scmp.lt.s32.totalorder %s17, 1
      %s131 = scalar_select %p130, %s17, 1
      %p132 = scmp.lt.s32.totalorder %s129, 11
      %s133 = scalar_select %p132, %s129, 11
      %p134 = scmp.lt.s32.totalorder %s19, 0
      %s135 = scalar_select %p134, %s19, 0
      %s136 = smul.addr %s133, 2
      %s137 = sadd.s32 %s135, %s136
      %s138 = smul.addr %s131, 24
      %s139 = sadd.s32 %s137, %s138
      %s140 = smul.addr %s139, 8
      %s141 = scalar_lea.vmem %s0, %s140
      %p142 = pneg %p56
      %p143 = pneg %p53
      %p144 = pneg %p86
      %p145 = pneg %p83
      %p146 = scmp.lt.s32.totalorder %s17, 1
      %s147 = scalar_select %p146, %s17, 1
      %p148 = scmp.lt.s32.totalorder %s18, 5
      %s149 = scalar_select %p148, %s18, 5
      %p150 = scmp.lt.s32.totalorder %s19, 0
      %s151 = scalar_select %p150, %s19, 0
      %s152 = sadd.s32 %s151, %s149
      %s153 = smul.addr %s147, 6
      %s154 = sadd.s32 %s152, %s153
      %s155 = smul.addr %s154, 8
      %s156 = scalar_lea.vmem %s1, %s155
      %s157 = smul.u32 2, %s18
      %p158 = scmp.lt.s32.totalorder %s17, 1
      %s159 = scalar_select %p158, %s17, 1
      %p160 = scmp.lt.s32.totalorder %s157, 11
      %s161 = scalar_select %p160, %s157, 11
      %p162 = scmp.lt.s32.totalorder %s19, 0
      %s163 = scalar_select %p162, %s19, 0
      %s164 = smul.addr %s161, 2
      %s165 = sadd.s32 %s163, %s164
      %s166 = smul.addr %s159, 24
      %s167 = sadd.s32 %s165, %s166
      %s168 = smul.addr %s167, 8
      %s169 = scalar_lea.vmem %s0, %s168
      %s170 = smul.u32 2, %s18
      %p171 = scmp.lt.s32.totalorder %s17, 1
      %s172 = scalar_select %p171, %s17, 1
      %p173 = scmp.lt.s32.totalorder %s18, 5
      %s174 = scalar_select %p173, %s18, 5
      %p175 = scmp.lt.s32.totalorder %s19, 0
      %s176 = scalar_select %p175, %s19, 0
      %s177 = sadd.s32 %s176, %s174
      %s178 = smul.addr %s172, 6
      %s179 = sadd.s32 %s177, %s178
      %s180 = smul.addr %s179, 8
      %s181 = scalar_lea.vmem %s1, %s180
      %v182 = vld [vmem:[%s169] sm:$0xff]
      %v183 = vld [vmem:[%s169 + $0x8] sm:$0xf]
      %v184 = vld [vmem:[%s169 + $0x10] sm:$0xff]
      %v185 = vld [vmem:[%s169 + $0x18] sm:$0xf]
      %vm186 = vcmask 64512
      %v187 = vsel %vm186, %v182, 0.0
      %v188 = vsel %vm186, %v184, 0.0
      %v189 = vadd.f32 %v187, %v188
      %vm190 = vcmask 60416
      %v191 = vsel %vm190, %v183, 0.0
      %v192 = vsel %vm190, %v185, 0.0
      %v193 = vadd.f32 %v191, %v192
      %vm194 = vcmask 58368
      %v195 = vsel %vm194, %v189, 0.0
      %v196 = vrot.slane %v195, 4
      %v197 = vadd.f32 %v195, %v196
      %v198 = vrot.slane %v197, 2
      %v199 = vadd.f32 %v197, %v198
      %v200 = vrot.slane %v199, 1
      %v201 = vadd.f32 %v199, %v200
      %v202 = vmul.f32 %v201, 0.25
      %vm203 = vcmask 57344
      %204 = vst.msk [vmem:[%s181] sm:$0x1] %vm203, %v202
      %v206 = vrot.slane %v189, 2
      %v208 = vsel %vm194, %v206, 0.0
      %v209 = vrot.slane %v208, 4
      %v210 = vadd.f32 %v208, %v209
      %v211 = vrot.slane %v210, 2
      %v212 = vadd.f32 %v210, %v211
      %v213 = vrot.slane %v212, 1
      %v214 = vadd.f32 %v212, %v213
      %v215 = vmul.f32 %v214, 0.25
      %216 = vst.msk [vmem:[%s181 + $0x1] sm:$0x1] %vm203, %v215
      %v217 = vrot.slane %v189, 4
      %v219 = vsel %vm194, %v217, 0.0
      %v220 = vrot.slane %v219, 4
      %v221 = vadd.f32 %v219, %v220
      %v222 = vrot.slane %v221, 2
      %v223 = vadd.f32 %v221, %v222
      %v224 = vrot.slane %v223, 1
      %v225 = vadd.f32 %v223, %v224
      %v226 = vmul.f32 %v225, 0.25
      %227 = vst.msk [vmem:[%s181 + $0x2] sm:$0x1] %vm203, %v226
      %v228 = vrot.slane %v189, 6
      %v230 = vsel %vm194, %v228, 0.0
      %v231 = vrot.slane %v230, 4
      %v232 = vadd.f32 %v230, %v231
      %v233 = vrot.slane %v232, 2
      %v234 = vadd.f32 %v232, %v233
      %v235 = vrot.slane %v234, 1
      %v236 = vadd.f32 %v234, %v235
      %v237 = vmul.f32 %v236, 0.25
      %238 = vst.msk [vmem:[%s181 + $0x3] sm:$0x1] %vm203, %v237
      %v239 = vsel %vm194, %v193, 0.0
      %v240 = vrot.slane %v239, 4
      %v241 = vadd.f32 %v239, %v240
      %v242 = vrot.slane %v241, 2
      %v243 = vadd.f32 %v241, %v242
      %v244 = vrot.slane %v243, 1
      %v245 = vadd.f32 %v243, %v244
      %v246 = vmul.f32 %v245, 0.25
      %247 = vst.msk [vmem:[%s181 + $0x4] sm:$0x1] %vm203, %v246
      %v249 = vrot.slane %v193, 2
      %v251 = vsel %vm194, %v249, 0.0
      %v252 = vrot.slane %v251, 4
      %v253 = vadd.f32 %v251, %v252
      %v254 = vrot.slane %v253, 2
      %v255 = vadd.f32 %v253, %v254
      %v256 = vrot.slane %v255, 1
      %v257 = vadd.f32 %v255, %v256
      %v258 = vmul.f32 %v257, 0.25
      %259 = vst.msk [vmem:[%s181 + $0x5] sm:$0x1] %vm203, %v258
      %p260 = scmp.lt.s32.totalorder %s17, 1
      %s261 = scalar_select %p260, %s17, 1
      %p262 = scmp.lt.s32.totalorder %s18, 5
      %s263 = scalar_select %p262, %s18, 5
      %p264 = scmp.lt.s32.totalorder %s19, 0
      %s265 = scalar_select %p264, %s19, 0
      %s266 = sadd.s32 %s265, %s263
      %s267 = smul.addr %s261, 6
      %s268 = sadd.s32 %s266, %s267
      %s269 = smul.addr %s268, 8
      %s270 = scalar_lea.vmem %s1, %s269
      // Predicated region
      $region25: #{tpu_custom_call.1} parent=23 // pred_check
        %p271 = pneg %p83
      $region26: #{tpu_custom_call.1} parent=23 // pred_check_branch
        %273 = sbr.rel (%p271) target = $region28
      $region27: #{tpu_custom_call.1} parent=23 // pred_region
        _
      $region28: #{tpu_custom_call.1} parent=23 // pred_fallthru
        _
    $region24: #{tpu_custom_call.1} parent=5 // pred_fallthru
      _
    %p274 = scmp.le.s32.totalorder 2, %s7
    // Predicated region
    $region29: #{tpu_custom_call.1} parent=5 // pred_check
      %p275 = pneg %p274
    $region30: #{tpu_custom_call.1} parent=5 // pred_check_branch
      %277 = sbr.rel (%p275) target = $region32
    $region31: #{tpu_custom_call.1} parent=5 // pred_region
      %s278 = ssub.s32 %s7, 2
      // Predicated region
      $region33: #{tpu_custom_call.1} parent=31 // pred_check
        %p279 = pneg %p89
      $region34: #{tpu_custom_call.1} parent=31 // pred_check_branch
        %281 = sbr.rel (%p279) target = $region36
      $region35: #{tpu_custom_call.1} parent=31 // pred_region
        %p282 = scmp.lt.s32.totalorder %s20, 1
        %s283 = scalar_select %p282, %s20, 1
        %p284 = scmp.lt.s32.totalorder %s21, 5
        %s285 = scalar_select %p284, %s21, 5
        %p286 = scmp.lt.s32.totalorder %s22, 0
        %s287 = scalar_select %p286, %s22, 0
        %s288 = sadd.s32 %s287, %s285
        %s289 = smul.addr %s283, 6
        %s290 = sadd.s32 %s288, %s289
        %s291 = smul.addr %s290, 8
        %s292 = scalar_lea.vmem %s1, %s291
      $region36: #{tpu_custom_call.1} parent=31 // pred_fallthru
        _
    $region32: #{tpu_custom_call.1} parent=5 // pred_fallthru
      _
  $region6: #{tpu_custom_call.1} parent=0 // loop_footer
    %s11 = sadd.s32 1, %s7
  $region7: #{tpu_custom_call.1} parent=0 // loop_footer_branch
    %6 = sbr.rel target = $region3
  $region8: #{tpu_custom_call.1} parent=0 // loop_exit
    _

</llo_original>
